<compile_context>
chip_gen: v5e
topology: v5e:2x2
jax: 0.10.0
libtpu: 0.0.40
codegen_flags: <defaults>
</compile_context>

<pallas_src>
import math

import jax
import jax.numpy as jnp
from jax.experimental import pallas as pl
from jax.experimental.pallas import tpu as pltpu


# ----------------------------------------------------------------------------
# Fused per-layer Pallas kernel (all meta-paths + semantic attention
#  [+ predict/log_softmax on the last layer])
# ----------------------------------------------------------------------------
def make_han_layer_kernel(num_meta_paths: int, num_heads: int, out_dim: int,
                          num_classes=None):
    M, H, D = num_meta_paths, num_heads, out_dim
    HD = H * D

    def kernel(*refs):
        if num_classes is None:
            (h_ref, adj_ref, w_ref, alb_ref, arf_ref, bf_ref,
             sw1_ref, sb1_ref, sw2t_ref, sb2_ref, emb_ref) = refs
            pw_ref = pb_ref = logp_ref = None
        else:
            (h_ref, adj_ref, w_ref, alb_ref, arf_ref, bf_ref,
             sw1_ref, sb1_ref, sw2t_ref, sb2_ref, pw_ref, pb_ref,
             emb_ref, logp_ref) = refs

        h = h_ref[...]                                           # (N, F_in)
        n = h.shape[0]

        # Per-head column selectors over the flattened (H*D) feature axis,
        # built once and reused for every meta-path (hoisted).
        col = jax.lax.broadcasted_iota(jnp.int32, (1, HD), 1)
        head_sel = [
            jnp.where((col >= hh * D) & (col < (hh + 1) * D), 1.0, 0.0)
            for hh in range(H)
        ]

        # ------------------ node-level (GAT) attention per meta-path --------
        z_list = []
        for m in range(M):
            # All-heads projection in one MXU pass of width H*D.
            feat_all = jnp.dot(h, w_ref[m],
                               preferred_element_type=jnp.float32)  # (N, HD)
            # attn_l scores for all heads in ONE matmul: alb_ref[m] is
            # block-structured (H, HD) so el_all[h, src] = <attn_l_h, feat_h[src]>.
            el_all = jax.lax.dot_general(
                alb_ref[m], feat_all, (((1,), (1,)), ((), ())),
                preferred_element_type=jnp.float32)                 # (H, N)
            ar_flat = arf_ref[m]                                    # (1, HD)
            mask = adj_ref[m] > 0.0                                 # (N, N), hoisted

            agg = jnp.zeros((n, HD), jnp.float32)
            for hh in range(H):
                sel = head_sel[hh]
                # er[dst] = <feat_dst (head hh), attn_r_hh>  : VPU mul + lane reduce
                er = jnp.sum(feat_all * (ar_flat * sel),
                             axis=-1, keepdims=True)                # (N, 1)
                # scores[dst, src] = leaky_relu(el[src] + er[dst], 0.2)
                s = er + el_all[hh:hh + 1, :]                       # (N, N)
                s = jnp.where(s > 0, s, 0.2 * s)
                s = jnp.where(mask, s, jnp.float32(-1e9))

                # masked softmax over incoming edges (src axis)
                s_max = jnp.max(s, axis=-1, keepdims=True)
                p = jnp.exp(s - s_max)
                p = jnp.where(mask, p, 0.0)
                denom = jnp.maximum(jnp.sum(p, axis=-1, keepdims=True),
                                    jnp.float32(1e-20))  # zero-in-degree guard
                alpha = p * pl.reciprocal(denom, approx=True)       # (N, N)

                # Aggregate against the full-width features and keep only this
                # head's block (keeps everything lane-dense, no narrow stores).
                agg = agg + sel * jnp.dot(alpha, feat_all,
                                          preferred_element_type=jnp.float32)

            zm = agg + bf_ref[m]                                    # flattened bias
            # ELU (alpha = 1)
            zm = jnp.where(zm > 0, zm, jnp.exp(jnp.minimum(zm, 0.0)) - 1.0)
            z_list.append(zm)                                       # (N, HD)

        # ------------------ semantic-level attention -------------------------
        w1 = sw1_ref[...]                                           # (HD, S)
        b1 = sb1_ref[...]                                           # (1, S)
        w2t = sw2t_ref[...]                                         # (1, S)
        b2 = sb2_ref[...]                                           # (1, 1)
        scores = []
        for zm in z_list:
            hp = jnp.tanh(jnp.dot(zm, w1, preferred_element_type=jnp.float32)
                          + b1)                                     # (N, S)
            # second Linear (S -> 1) as VPU multiply + lane reduce
            scores.append(jnp.sum(hp * w2t, axis=-1, keepdims=True) + b2)

        # softmax over meta-paths, per node
        s_max = scores[0]
        for s in scores[1:]:
            s_max = jnp.maximum(s_max, s)
        exps = [jnp.exp(s - s_max) for s in scores]
        denom = exps[0]
        for e in exps[1:]:
            denom = denom + e
        inv = pl.reciprocal(denom, approx=True)                     # (N, 1)

        out = (exps[0] * inv) * z_list[0]
        for mm in range(1, M):
            out = out + (exps[mm] * inv) * z_list[mm]

        emb_ref[...] = out.astype(emb_ref.dtype)                    # one dense store

        # ------------------ fused predict + log_softmax (last layer) --------
        if num_classes is not None:
            logits = (jnp.dot(out, pw_ref[...],
                              preferred_element_type=jnp.float32) + pb_ref[...])
            mx = jnp.max(logits, axis=-1, keepdims=True)
            lse = jnp.log(jnp.sum(jnp.exp(logits - mx), axis=-1,
                                  keepdims=True)) + mx
            logp_ref[...] = (logits - lse).astype(logp_ref.dtype)

    return kernel


# ----------------------------------------------------------------------------
# pallas_call wrapper (full-array blocks, single grid step — everything fits
# VMEM at these sizes)
# ----------------------------------------------------------------------------
def _full_spec(shape):
    nd = len(shape)
    return pl.BlockSpec(shape, lambda i, _n=nd: (0,) * _n)


def _nbytes(x):
    return math.prod(x.shape) * jnp.dtype(x.dtype).itemsize


def _layer_cost(n, f_in, m, heads, d, s, num_classes):
    hd = heads * d
    flops = m * (2 * n * f_in * hd                      # projection
                 + 2 * heads * hd * n                   # attn_l scores
                 + heads * (10 * n * n + 2 * n * n * hd + 3 * n * hd)
                 + 2 * n * hd * s + 4 * n * s           # semantic projection
                 + 4 * n * hd)                          # weighted sum
    trans = m * (heads * n * n + n * s) + 2 * m * n
    if num_classes is not None:
        flops += 2 * n * hd * num_classes + 4 * n * num_classes
        trans += n * num_classes
    return int(flops), int(trans)


def run_han_layer(h, adjs, layer, hidden_size, predict=None):
    n = h.shape[0]
    m = adjs.shape[0]
    heads = layer["heads"]
    hd = heads * hidden_size
    sem = layer["sem"]

    args = [h, adjs, layer["W"], layer["al_blk"], layer["ar_flat"],
            layer["b_flat"], sem["w1"], sem["b1"], sem["w2t"], sem["b2"]]

    num_classes = None
    if predict is not None:
        num_classes = predict["W"].shape[1]
        args += [predict["W"], predict["b"]]
        out_shape = (jax.ShapeDtypeStruct((n, hd), jnp.float32),
                     jax.ShapeDtypeStruct((n, num_classes), jnp.float32))
        out_specs = (_full_spec((n, hd)), _full_spec((n, num_classes)))
    else:
        out_shape = jax.ShapeDtypeStruct((n, hd), jnp.float32)
        out_specs = _full_spec((n, hd))

    flops, trans = _layer_cost(n, h.shape[1], m, heads, hidden_size,
                               sem["w1"].shape[1], num_classes)
    outs = out_shape if isinstance(out_shape, tuple) else (out_shape,)
    bytes_acc = sum(_nbytes(a) for a in args) + sum(_nbytes(o) for o in outs)

    kernel = make_han_layer_kernel(m, heads, hidden_size, num_classes)
    return pl.pallas_call(
        kernel,
        grid=(1,),
        in_specs=[_full_spec(a.shape) for a in args],
        out_specs=out_specs,
        out_shape=out_shape,
        compiler_params=pltpu.CompilerParams(
            dimension_semantics=("arbitrary",),
            vmem_limit_bytes=32 * 1024 * 1024),
        cost_estimate=pl.CostEstimate(flops=flops, transcendentals=trans,
                                      bytes_accessed=int(bytes_acc)),
    )(*args)


# ----------------------------------------------------------------------------
# Parameter construction (deterministic, pre-packed in the kernel's layouts)
# ----------------------------------------------------------------------------
def init_han_params(key, num_meta_paths, in_size, hidden_size, out_size,
                    num_heads, sem_hidden=128):
    params = {"layers": []}
    f_in = in_size
    for h_heads in num_heads:
        hd = h_heads * hidden_size
        key, kw, ka, kb, kc, k1, k2, k3, k4 = jax.random.split(key, 9)
        scale = 1.0 / jnp.sqrt(jnp.float32(f_in))
        W = jax.random.normal(kw, (num_meta_paths, f_in, hd), jnp.float32) * scale
        attn_l = jax.random.normal(ka, (num_meta_paths, h_heads, hidden_size),
                                   jnp.float32) * 0.1
        attn_r = jax.random.normal(kb, (num_meta_paths, h_heads, hidden_size),
                                   jnp.float32) * 0.1
        bias = jax.random.normal(kc, (num_meta_paths, h_heads, hidden_size),
                                 jnp.float32) * 0.1

        # Block-structured attn_l: al_blk[m, h, h*D + d] = attn_l[m, h, d]
        eye = jnp.eye(h_heads, dtype=jnp.float32)
        al_blk = (eye[None, :, :, None] * attn_l[:, :, None, :]).reshape(
            num_meta_paths, h_heads, hd)
        ar_flat = attn_r.reshape(num_meta_paths, 1, hd)
        b_flat = bias.reshape(num_meta_paths, 1, hd)

        sem = {
            "w1": jax.random.normal(k1, (hd, sem_hidden), jnp.float32)
                  * (1.0 / jnp.sqrt(jnp.float32(hd))),
            "b1": jax.random.normal(k2, (1, sem_hidden), jnp.float32) * 0.1,
            # second projection stored transposed (1, S) so the kernel can use a
            # VPU reduce instead of a degenerate 1-column matmul
            "w2t": jax.random.normal(k3, (1, sem_hidden), jnp.float32)
                   * (1.0 / jnp.sqrt(jnp.float32(sem_hidden))),
            "b2": jax.random.normal(k4, (1, 1), jnp.float32) * 0.1,
        }
        params["layers"].append({
            "W": W, "al_blk": al_blk, "ar_flat": ar_flat, "b_flat": b_flat,
            "sem": sem, "heads": h_heads})
        f_in = hd

    key, kp, kpb = jax.random.split(key, 3)
    params["predict"] = {
        "W": jax.random.normal(kp, (f_in, out_size), jnp.float32)
             * (1.0 / jnp.sqrt(jnp.float32(f_in))),
        "b": jax.random.normal(kpb, (1, out_size), jnp.float32) * 0.1,
    }
    return params


def han_forward(params, adjs, h, hidden_size):
    """adjs: (M, N, N) dense adjacency masks; h: (N, in_size)."""
    layers = params["layers"]
    n_layers = len(layers)
    log_probs = None
    for li, layer in enumerate(layers):
        if li == n_layers - 1:
            h, log_probs = run_han_layer(h, adjs, layer, hidden_size,
                                         predict=params["predict"])
        else:
            h = run_han_layer(h, adjs, layer, hidden_size)
    return log_probs, h


# ----------------------------------------------------------------------------
# Main
# ----------------------------------------------------------------------------
if __name__ == "__main__":
    NUM_META_PATHS = 2
    N_NODES = 16
    IN_SIZE = 8
    HIDDEN_SIZE = 8
    OUT_SIZE = 4
    NUM_HEADS = [2, 2]

    key = jax.random.PRNGKey(0)
    key, kh, kg0, kg1 = jax.random.split(key, 4)

    # node features
    h = jax.random.normal(kh, (N_NODES, IN_SIZE), jnp.float32)

    # dense adjacency masks per meta-path (self-loops guaranteed)
    def make_adj(k):
        a = jax.random.bernoulli(k, 0.3, (N_NODES, N_NODES)).astype(jnp.float32)
        return jnp.maximum(a, jnp.eye(N_NODES, dtype=jnp.float32))

    adjs = jnp.stack([make_adj(kg0), make_adj(kg1)], axis=0)   # (M, N, N)

    params = init_han_params(key, NUM_META_PATHS, IN_SIZE, HIDDEN_SIZE,
                             OUT_SIZE, NUM_HEADS)

    log_probs, write_emb = han_forward(params, adjs, h, HIDDEN_SIZE)
    log_probs = jax.block_until_ready(log_probs)
    write_emb = jax.block_until_ready(write_emb)

    # self-consistency: log_softmax rows should exponentiate-sum to 1
    row_sums = jnp.exp(log_probs).sum(axis=1)
    assert log_probs.shape == (N_NODES, OUT_SIZE)
    assert write_emb.shape == (N_NODES, HIDDEN_SIZE * NUM_HEADS[-1])
    assert bool(jnp.all(jnp.isfinite(log_probs)))
    assert bool(jnp.all(jnp.isfinite(write_emb)))
    assert bool(jnp.all(jnp.abs(row_sums - 1.0) < 1e-3))

    print("KERNEL_OK")
</pallas_src>

<mosaic_0001>
module attributes {stable_mosaic.version = 11 : i64} {
  func.func @kernel(%arg0: i32, %arg1: memref<16x8xf32, #tpu.memory_space<vmem>>, %arg2: memref<2x16x16xf32, #tpu.memory_space<vmem>>, %arg3: memref<2x8x16xf32, #tpu.memory_space<vmem>>, %arg4: memref<2x2x16xf32, #tpu.memory_space<vmem>>, %arg5: memref<2x1x16xf32, #tpu.memory_space<vmem>>, %arg6: memref<2x1x16xf32, #tpu.memory_space<vmem>>, %arg7: memref<16x128xf32, #tpu.memory_space<vmem>>, %arg8: memref<1x128xf32, #tpu.memory_space<vmem>>, %arg9: memref<1x128xf32, #tpu.memory_space<vmem>>, %arg10: memref<1x1xf32, #tpu.memory_space<vmem>>, %arg11: memref<16x16xf32, #tpu.memory_space<vmem>>) attributes {dimension_semantics = [#tpu.dimension_semantics<arbitrary>], iteration_bounds = array<i64: 1>, scalar_prefetch = 0 : i64, scratch_operands = 0 : i64, tpu.core_type = #tpu.core_type<tc>, window_params = [{pipeline_mode = #tpu.pipeline_mode<synchronous>, transform_indices = @transform_0, window_bounds = array<i64: 16, 8>}, {pipeline_mode = #tpu.pipeline_mode<synchronous>, transform_indices = @transform_1, window_bounds = array<i64: 2, 16, 16>}, {pipeline_mode = #tpu.pipeline_mode<synchronous>, transform_indices = @transform_2, window_bounds = array<i64: 2, 8, 16>}, {pipeline_mode = #tpu.pipeline_mode<synchronous>, transform_indices = @transform_3, window_bounds = array<i64: 2, 2, 16>}, {pipeline_mode = #tpu.pipeline_mode<synchronous>, transform_indices = @transform_4, window_bounds = array<i64: 2, 1, 16>}, {pipeline_mode = #tpu.pipeline_mode<synchronous>, transform_indices = @transform_5, window_bounds = array<i64: 2, 1, 16>}, {pipeline_mode = #tpu.pipeline_mode<synchronous>, transform_indices = @transform_6, window_bounds = array<i64: 16, 128>}, {pipeline_mode = #tpu.pipeline_mode<synchronous>, transform_indices = @transform_7, window_bounds = array<i64: 1, 128>}, {pipeline_mode = #tpu.pipeline_mode<synchronous>, transform_indices = @transform_8, window_bounds = array<i64: 1, 128>}, {pipeline_mode = #tpu.pipeline_mode<synchronous>, transform_indices = @transform_9, window_bounds = array<i64: 1, 1>}, {pipeline_mode = #tpu.pipeline_mode<synchronous>, transform_indices = @transform_10, window_bounds = array<i64: 16, 16>}]} {
    %c0 = arith.constant 0 : index
    %c0_0 = arith.constant 0 : index
    %0 = vector.load %arg1[%c0, %c0_0] : memref<16x8xf32, #tpu.memory_space<vmem>>, vector<16x8xf32>
    %1 = tpu.iota {dimensions = array<i32: 1>} : vector<1x16xi32>
    %c0_i32 = arith.constant 0 : i32
    %2 = vector.broadcast %c0_i32 : i32 to vector<1x16xi32>
    %3 = arith.cmpi sge, %1, %2 : vector<1x16xi32>
    %c8_i32 = arith.constant 8 : i32
    %4 = vector.broadcast %c8_i32 : i32 to vector<1x16xi32>
    %5 = arith.cmpi slt, %1, %4 : vector<1x16xi32>
    %6 = arith.andi %3, %5 : vector<1x16xi1>
    %cst = arith.constant 1.000000e+00 : f32
    %cst_1 = arith.constant 0.000000e+00 : f32
    %7 = vector.broadcast %cst : f32 to vector<1x16xf32>
    %8 = vector.broadcast %cst_1 : f32 to vector<1x16xf32>
    %9 = arith.select %6, %7, %8 : vector<1x16xi1>, vector<1x16xf32>
    %c8_i32_2 = arith.constant 8 : i32
    %10 = vector.broadcast %c8_i32_2 : i32 to vector<1x16xi32>
    %11 = arith.cmpi sge, %1, %10 : vector<1x16xi32>
    %c16_i32 = arith.constant 16 : i32
    %12 = vector.broadcast %c16_i32 : i32 to vector<1x16xi32>
    %13 = arith.cmpi slt, %1, %12 : vector<1x16xi32>
    %14 = arith.andi %11, %13 : vector<1x16xi1>
    %cst_3 = arith.constant 1.000000e+00 : f32
    %cst_4 = arith.constant 0.000000e+00 : f32
    %15 = vector.broadcast %cst_3 : f32 to vector<1x16xf32>
    %16 = vector.broadcast %cst_4 : f32 to vector<1x16xf32>
    %17 = arith.select %14, %15, %16 : vector<1x16xi1>, vector<1x16xf32>
    %c0_5 = arith.constant 0 : index
    %c0_6 = arith.constant 0 : index
    %c0_7 = arith.constant 0 : index
    %18 = vector.load %arg3[%c0_5, %c0_6, %c0_7] : memref<2x8x16xf32, #tpu.memory_space<vmem>>, vector<1x8x16xf32>
    %19 = vector.shape_cast %18 : vector<1x8x16xf32> to vector<8x16xf32>
    %cst_8 = arith.constant dense<0.000000e+00> : vector<16x16xf32>
    %20 = tpu.matmul %0, %19, %cst_8 {dimension_numbers = #tpu.dot_dimension_numbers<[1], [0], [0], [1], [0, 0, 1, 1], [], []>} : vector<16x8xf32>, vector<8x16xf32>, vector<16x16xf32> -> vector<16x16xf32>
    %c0_9 = arith.constant 0 : index
    %c0_10 = arith.constant 0 : index
    %c0_11 = arith.constant 0 : index
    %21 = vector.load %arg4[%c0_9, %c0_10, %c0_11] : memref<2x2x16xf32, #tpu.memory_space<vmem>>, vector<1x2x16xf32>
    %22 = vector.shape_cast %21 : vector<1x2x16xf32> to vector<2x16xf32>
    %cst_12 = arith.constant dense<0.000000e+00> : vector<2x16xf32>
    %23 = tpu.matmul %22, %20, %cst_12 {dimension_numbers = #tpu.dot_dimension_numbers<[1], [1], [0], [0], [0, 0, 1, 0], [], []>} : vector<2x16xf32>, vector<16x16xf32>, vector<2x16xf32> -> vector<2x16xf32>
    %c0_13 = arith.constant 0 : index
    %c0_14 = arith.constant 0 : index
    %c0_15 = arith.constant 0 : index
    %24 = vector.load %arg5[%c0_13, %c0_14, %c0_15] : memref<2x1x16xf32, #tpu.memory_space<vmem>>, vector<1x1x16xf32>
    %25 = vector.shape_cast %24 : vector<1x1x16xf32> to vector<1x16xf32>
    %c0_16 = arith.constant 0 : index
    %c0_17 = arith.constant 0 : index
    %c0_18 = arith.constant 0 : index
    %26 = vector.load %arg2[%c0_16, %c0_17, %c0_18] : memref<2x16x16xf32, #tpu.memory_space<vmem>>, vector<1x16x16xf32>
    %27 = vector.shape_cast %26 : vector<1x16x16xf32> to vector<16x16xf32>
    %cst_19 = arith.constant 0.000000e+00 : f32
    %28 = vector.broadcast %cst_19 : f32 to vector<16x16xf32>
    %29 = arith.cmpf ogt, %27, %28 : vector<16x16xf32>
    %cst_20 = arith.constant 0.000000e+00 : f32
    %30 = vector.broadcast %cst_20 : f32 to vector<16x16xf32>
    %31 = arith.mulf %25, %9 : vector<1x16xf32>
    %32 = vector.broadcast %31 : vector<1x16xf32> to vector<16x16xf32>
    %33 = arith.mulf %20, %32 : vector<16x16xf32>
    %cst_21 = arith.constant dense<0.000000e+00> : vector<16xf32>
    %34 = vector.multi_reduction <add>, %33, %cst_21 [1] : vector<16x16xf32> to vector<16xf32>
    %35 = vector.shape_cast %34 : vector<16xf32> to vector<16x1xf32>
    %36 = vector.extract_strided_slice %23 {offsets = [0, 0], sizes = [1, 16], strides = [1, 1]} : vector<2x16xf32> to vector<1x16xf32>
    %37 = vector.broadcast %35 : vector<16x1xf32> to vector<16x16xf32>
    %38 = vector.broadcast %36 : vector<1x16xf32> to vector<16x16xf32>
    %39 = arith.addf %37, %38 : vector<16x16xf32>
    %cst_22 = arith.constant 0.000000e+00 : f32
    %40 = vector.broadcast %cst_22 : f32 to vector<16x16xf32>
    %41 = arith.cmpf ogt, %39, %40 : vector<16x16xf32>
    %cst_23 = arith.constant 2.000000e-01 : f32
    %42 = vector.broadcast %cst_23 : f32 to vector<16x16xf32>
    %43 = arith.mulf %42, %39 : vector<16x16xf32>
    %44 = arith.select %41, %39, %43 : vector<16x16xi1>, vector<16x16xf32>
    %cst_24 = arith.constant -1.000000e+09 : f32
    %45 = vector.broadcast %cst_24 : f32 to vector<16x16xf32>
    %46 = arith.select %29, %44, %45 : vector<16x16xi1>, vector<16x16xf32>
    %cst_25 = arith.constant dense<0xFF800000> : vector<16xf32>
    %47 = vector.multi_reduction <maximumf>, %46, %cst_25 [1] : vector<16x16xf32> to vector<16xf32>
    %48 = vector.shape_cast %47 : vector<16xf32> to vector<16x1xf32>
    %49 = vector.broadcast %48 : vector<16x1xf32> to vector<16x16xf32>
    %50 = arith.subf %46, %49 : vector<16x16xf32>
    %51 = math.exp %50 : vector<16x16xf32>
    %cst_26 = arith.constant 0.000000e+00 : f32
    %52 = vector.broadcast %cst_26 : f32 to vector<16x16xf32>
    %53 = arith.select %29, %51, %52 : vector<16x16xi1>, vector<16x16xf32>
    %cst_27 = arith.constant dense<0.000000e+00> : vector<16xf32>
    %54 = vector.multi_reduction <add>, %53, %cst_27 [1] : vector<16x16xf32> to vector<16xf32>
    %55 = vector.shape_cast %54 : vector<16xf32> to vector<16x1xf32>
    %cst_28 = arith.constant 9.99999968E-21 : f32
    %56 = vector.broadcast %cst_28 : f32 to vector<16x1xf32>
    %57 = arith.maximumf %55, %56 : vector<16x1xf32>
    %58 = tpu.reciprocal %57 {approx = true} : vector<16x1xf32> -> vector<16x1xf32>
    %59 = vector.broadcast %58 : vector<16x1xf32> to vector<16x16xf32>
    %60 = arith.mulf %53, %59 : vector<16x16xf32>
    %cst_29 = arith.constant dense<0.000000e+00> : vector<16x16xf32>
    %61 = tpu.matmul %60, %20, %cst_29 {dimension_numbers = #tpu.dot_dimension_numbers<[1], [0], [0], [1], [0, 0, 1, 1], [], []>} : vector<16x16xf32>, vector<16x16xf32>, vector<16x16xf32> -> vector<16x16xf32>
    %62 = vector.broadcast %9 : vector<1x16xf32> to vector<16x16xf32>
    %63 = arith.mulf %62, %61 : vector<16x16xf32>
    %64 = arith.addf %30, %63 : vector<16x16xf32>
    %65 = arith.mulf %25, %17 : vector<1x16xf32>
    %66 = vector.broadcast %65 : vector<1x16xf32> to vector<16x16xf32>
    %67 = arith.mulf %20, %66 : vector<16x16xf32>
    %cst_30 = arith.constant dense<0.000000e+00> : vector<16xf32>
    %68 = vector.multi_reduction <add>, %67, %cst_30 [1] : vector<16x16xf32> to vector<16xf32>
    %69 = vector.shape_cast %68 : vector<16xf32> to vector<16x1xf32>
    %70 = vector.extract_strided_slice %23 {offsets = [1, 0], sizes = [1, 16], strides = [1, 1]} : vector<2x16xf32> to vector<1x16xf32>
    %71 = vector.broadcast %69 : vector<16x1xf32> to vector<16x16xf32>
    %72 = vector.broadcast %70 : vector<1x16xf32> to vector<16x16xf32>
    %73 = arith.addf %71, %72 : vector<16x16xf32>
    %cst_31 = arith.constant 0.000000e+00 : f32
    %74 = vector.broadcast %cst_31 : f32 to vector<16x16xf32>
    %75 = arith.cmpf ogt, %73, %74 : vector<16x16xf32>
    %cst_32 = arith.constant 2.000000e-01 : f32
    %76 = vector.broadcast %cst_32 : f32 to vector<16x16xf32>
    %77 = arith.mulf %76, %73 : vector<16x16xf32>
    %78 = arith.select %75, %73, %77 : vector<16x16xi1>, vector<16x16xf32>
    %cst_33 = arith.constant -1.000000e+09 : f32
    %79 = vector.broadcast %cst_33 : f32 to vector<16x16xf32>
    %80 = arith.select %29, %78, %79 : vector<16x16xi1>, vector<16x16xf32>
    %cst_34 = arith.constant dense<0xFF800000> : vector<16xf32>
    %81 = vector.multi_reduction <maximumf>, %80, %cst_34 [1] : vector<16x16xf32> to vector<16xf32>
    %82 = vector.shape_cast %81 : vector<16xf32> to vector<16x1xf32>
    %83 = vector.broadcast %82 : vector<16x1xf32> to vector<16x16xf32>
    %84 = arith.subf %80, %83 : vector<16x16xf32>
    %85 = math.exp %84 : vector<16x16xf32>
    %cst_35 = arith.constant 0.000000e+00 : f32
    %86 = vector.broadcast %cst_35 : f32 to vector<16x16xf32>
    %87 = arith.select %29, %85, %86 : vector<16x16xi1>, vector<16x16xf32>
    %cst_36 = arith.constant dense<0.000000e+00> : vector<16xf32>
    %88 = vector.multi_reduction <add>, %87, %cst_36 [1] : vector<16x16xf32> to vector<16xf32>
    %89 = vector.shape_cast %88 : vector<16xf32> to vector<16x1xf32>
    %cst_37 = arith.constant 9.99999968E-21 : f32
    %90 = vector.broadcast %cst_37 : f32 to vector<16x1xf32>
    %91 = arith.maximumf %89, %90 : vector<16x1xf32>
    %92 = tpu.reciprocal %91 {approx = true} : vector<16x1xf32> -> vector<16x1xf32>
    %93 = vector.broadcast %92 : vector<16x1xf32> to vector<16x16xf32>
    %94 = arith.mulf %87, %93 : vector<16x16xf32>
    %cst_38 = arith.constant dense<0.000000e+00> : vector<16x16xf32>
    %95 = tpu.matmul %94, %20, %cst_38 {dimension_numbers = #tpu.dot_dimension_numbers<[1], [0], [0], [1], [0, 0, 1, 1], [], []>} : vector<16x16xf32>, vector<16x16xf32>, vector<16x16xf32> -> vector<16x16xf32>
    %96 = vector.broadcast %17 : vector<1x16xf32> to vector<16x16xf32>
    %97 = arith.mulf %96, %95 : vector<16x16xf32>
    %98 = arith.addf %64, %97 : vector<16x16xf32>
    %c0_39 = arith.constant 0 : index
    %c0_40 = arith.constant 0 : index
    %c0_41 = arith.constant 0 : index
    %99 = vector.load %arg6[%c0_39, %c0_40, %c0_41] : memref<2x1x16xf32, #tpu.memory_space<vmem>>, vector<1x1x16xf32>
    %100 = vector.shape_cast %99 : vector<1x1x16xf32> to vector<1x16xf32>
    %101 = vector.broadcast %100 : vector<1x16xf32> to vector<16x16xf32>
    %102 = arith.addf %98, %101 : vector<16x16xf32>
    %cst_42 = arith.constant 0.000000e+00 : f32
    %103 = vector.broadcast %cst_42 : f32 to vector<16x16xf32>
    %104 = arith.cmpf ogt, %102, %103 : vector<16x16xf32>
    %cst_43 = arith.constant 0.000000e+00 : f32
    %105 = vector.broadcast %cst_43 : f32 to vector<16x16xf32>
    %106 = arith.minimumf %102, %105 : vector<16x16xf32>
    %107 = math.exp %106 : vector<16x16xf32>
    %cst_44 = arith.constant 1.000000e+00 : f32
    %108 = vector.broadcast %cst_44 : f32 to vector<16x16xf32>
    %109 = arith.subf %107, %108 : vector<16x16xf32>
    %110 = arith.select %104, %102, %109 : vector<16x16xi1>, vector<16x16xf32>
    %c1 = arith.constant 1 : index
    %c0_45 = arith.constant 0 : index
    %c0_46 = arith.constant 0 : index
    %111 = vector.load %arg3[%c1, %c0_45, %c0_46] : memref<2x8x16xf32, #tpu.memory_space<vmem>>, vector<1x8x16xf32>
    %112 = vector.shape_cast %111 : vector<1x8x16xf32> to vector<8x16xf32>
    %cst_47 = arith.constant dense<0.000000e+00> : vector<16x16xf32>
    %113 = tpu.matmul %0, %112, %cst_47 {dimension_numbers = #tpu.dot_dimension_numbers<[1], [0], [0], [1], [0, 0, 1, 1], [], []>} : vector<16x8xf32>, vector<8x16xf32>, vector<16x16xf32> -> vector<16x16xf32>
    %c1_48 = arith.constant 1 : index
    %c0_49 = arith.constant 0 : index
    %c0_50 = arith.constant 0 : index
    %114 = vector.load %arg4[%c1_48, %c0_49, %c0_50] : memref<2x2x16xf32, #tpu.memory_space<vmem>>, vector<1x2x16xf32>
    %115 = vector.shape_cast %114 : vector<1x2x16xf32> to vector<2x16xf32>
    %cst_51 = arith.constant dense<0.000000e+00> : vector<2x16xf32>
    %116 = tpu.matmul %115, %113, %cst_51 {dimension_numbers = #tpu.dot_dimension_numbers<[1], [1], [0], [0], [0, 0, 1, 0], [], []>} : vector<2x16xf32>, vector<16x16xf32>, vector<2x16xf32> -> vector<2x16xf32>
    %c1_52 = arith.constant 1 : index
    %c0_53 = arith.constant 0 : index
    %c0_54 = arith.constant 0 : index
    %117 = vector.load %arg5[%c1_52, %c0_53, %c0_54] : memref<2x1x16xf32, #tpu.memory_space<vmem>>, vector<1x1x16xf32>
    %118 = vector.shape_cast %117 : vector<1x1x16xf32> to vector<1x16xf32>
    %c1_55 = arith.constant 1 : index
    %c0_56 = arith.constant 0 : index
    %c0_57 = arith.constant 0 : index
    %119 = vector.load %arg2[%c1_55, %c0_56, %c0_57] : memref<2x16x16xf32, #tpu.memory_space<vmem>>, vector<1x16x16xf32>
    %120 = vector.shape_cast %119 : vector<1x16x16xf32> to vector<16x16xf32>
    %cst_58 = arith.constant 0.000000e+00 : f32
    %121 = vector.broadcast %cst_58 : f32 to vector<16x16xf32>
    %122 = arith.cmpf ogt, %120, %121 : vector<16x16xf32>
    %cst_59 = arith.constant 0.000000e+00 : f32
    %123 = vector.broadcast %cst_59 : f32 to vector<16x16xf32>
    %124 = arith.mulf %118, %9 : vector<1x16xf32>
    %125 = vector.broadcast %124 : vector<1x16xf32> to vector<16x16xf32>
    %126 = arith.mulf %113, %125 : vector<16x16xf32>
    %cst_60 = arith.constant dense<0.000000e+00> : vector<16xf32>
    %127 = vector.multi_reduction <add>, %126, %cst_60 [1] : vector<16x16xf32> to vector<16xf32>
    %128 = vector.shape_cast %127 : vector<16xf32> to vector<16x1xf32>
    %129 = vector.extract_strided_slice %116 {offsets = [0, 0], sizes = [1, 16], strides = [1, 1]} : vector<2x16xf32> to vector<1x16xf32>
    %130 = vector.broadcast %128 : vector<16x1xf32> to vector<16x16xf32>
    %131 = vector.broadcast %129 : vector<1x16xf32> to vector<16x16xf32>
    %132 = arith.addf %130, %131 : vector<16x16xf32>
    %cst_61 = arith.constant 0.000000e+00 : f32
    %133 = vector.broadcast %cst_61 : f32 to vector<16x16xf32>
    %134 = arith.cmpf ogt, %132, %133 : vector<16x16xf32>
    %cst_62 = arith.constant 2.000000e-01 : f32
    %135 = vector.broadcast %cst_62 : f32 to vector<16x16xf32>
    %136 = arith.mulf %135, %132 : vector<16x16xf32>
    %137 = arith.select %134, %132, %136 : vector<16x16xi1>, vector<16x16xf32>
    %cst_63 = arith.constant -1.000000e+09 : f32
    %138 = vector.broadcast %cst_63 : f32 to vector<16x16xf32>
    %139 = arith.select %122, %137, %138 : vector<16x16xi1>, vector<16x16xf32>
    %cst_64 = arith.constant dense<0xFF800000> : vector<16xf32>
    %140 = vector.multi_reduction <maximumf>, %139, %cst_64 [1] : vector<16x16xf32> to vector<16xf32>
    %141 = vector.shape_cast %140 : vector<16xf32> to vector<16x1xf32>
    %142 = vector.broadcast %141 : vector<16x1xf32> to vector<16x16xf32>
    %143 = arith.subf %139, %142 : vector<16x16xf32>
    %144 = math.exp %143 : vector<16x16xf32>
    %cst_65 = arith.constant 0.000000e+00 : f32
    %145 = vector.broadcast %cst_65 : f32 to vector<16x16xf32>
    %146 = arith.select %122, %144, %145 : vector<16x16xi1>, vector<16x16xf32>
    %cst_66 = arith.constant dense<0.000000e+00> : vector<16xf32>
    %147 = vector.multi_reduction <add>, %146, %cst_66 [1] : vector<16x16xf32> to vector<16xf32>
    %148 = vector.shape_cast %147 : vector<16xf32> to vector<16x1xf32>
    %cst_67 = arith.constant 9.99999968E-21 : f32
    %149 = vector.broadcast %cst_67 : f32 to vector<16x1xf32>
    %150 = arith.maximumf %148, %149 : vector<16x1xf32>
    %151 = tpu.reciprocal %150 {approx = true} : vector<16x1xf32> -> vector<16x1xf32>
    %152 = vector.broadcast %151 : vector<16x1xf32> to vector<16x16xf32>
    %153 = arith.mulf %146, %152 : vector<16x16xf32>
    %cst_68 = arith.constant dense<0.000000e+00> : vector<16x16xf32>
    %154 = tpu.matmul %153, %113, %cst_68 {dimension_numbers = #tpu.dot_dimension_numbers<[1], [0], [0], [1], [0, 0, 1, 1], [], []>} : vector<16x16xf32>, vector<16x16xf32>, vector<16x16xf32> -> vector<16x16xf32>
    %155 = vector.broadcast %9 : vector<1x16xf32> to vector<16x16xf32>
    %156 = arith.mulf %155, %154 : vector<16x16xf32>
    %157 = arith.addf %123, %156 : vector<16x16xf32>
    %158 = arith.mulf %118, %17 : vector<1x16xf32>
    %159 = vector.broadcast %158 : vector<1x16xf32> to vector<16x16xf32>
    %160 = arith.mulf %113, %159 : vector<16x16xf32>
    %cst_69 = arith.constant dense<0.000000e+00> : vector<16xf32>
    %161 = vector.multi_reduction <add>, %160, %cst_69 [1] : vector<16x16xf32> to vector<16xf32>
    %162 = vector.shape_cast %161 : vector<16xf32> to vector<16x1xf32>
    %163 = vector.extract_strided_slice %116 {offsets = [1, 0], sizes = [1, 16], strides = [1, 1]} : vector<2x16xf32> to vector<1x16xf32>
    %164 = vector.broadcast %162 : vector<16x1xf32> to vector<16x16xf32>
    %165 = vector.broadcast %163 : vector<1x16xf32> to vector<16x16xf32>
    %166 = arith.addf %164, %165 : vector<16x16xf32>
    %cst_70 = arith.constant 0.000000e+00 : f32
    %167 = vector.broadcast %cst_70 : f32 to vector<16x16xf32>
    %168 = arith.cmpf ogt, %166, %167 : vector<16x16xf32>
    %cst_71 = arith.constant 2.000000e-01 : f32
    %169 = vector.broadcast %cst_71 : f32 to vector<16x16xf32>
    %170 = arith.mulf %169, %166 : vector<16x16xf32>
    %171 = arith.select %168, %166, %170 : vector<16x16xi1>, vector<16x16xf32>
    %cst_72 = arith.constant -1.000000e+09 : f32
    %172 = vector.broadcast %cst_72 : f32 to vector<16x16xf32>
    %173 = arith.select %122, %171, %172 : vector<16x16xi1>, vector<16x16xf32>
    %cst_73 = arith.constant dense<0xFF800000> : vector<16xf32>
    %174 = vector.multi_reduction <maximumf>, %173, %cst_73 [1] : vector<16x16xf32> to vector<16xf32>
    %175 = vector.shape_cast %174 : vector<16xf32> to vector<16x1xf32>
    %176 = vector.broadcast %175 : vector<16x1xf32> to vector<16x16xf32>
    %177 = arith.subf %173, %176 : vector<16x16xf32>
    %178 = math.exp %177 : vector<16x16xf32>
    %cst_74 = arith.constant 0.000000e+00 : f32
    %179 = vector.broadcast %cst_74 : f32 to vector<16x16xf32>
    %180 = arith.select %122, %178, %179 : vector<16x16xi1>, vector<16x16xf32>
    %cst_75 = arith.constant dense<0.000000e+00> : vector<16xf32>
    %181 = vector.multi_reduction <add>, %180, %cst_75 [1] : vector<16x16xf32> to vector<16xf32>
    %182 = vector.shape_cast %181 : vector<16xf32> to vector<16x1xf32>
    %cst_76 = arith.constant 9.99999968E-21 : f32
    %183 = vector.broadcast %cst_76 : f32 to vector<16x1xf32>
    %184 = arith.maximumf %182, %183 : vector<16x1xf32>
    %185 = tpu.reciprocal %184 {approx = true} : vector<16x1xf32> -> vector<16x1xf32>
    %186 = vector.broadcast %185 : vector<16x1xf32> to vector<16x16xf32>
    %187 = arith.mulf %180, %186 : vector<16x16xf32>
    %cst_77 = arith.constant dense<0.000000e+00> : vector<16x16xf32>
    %188 = tpu.matmul %187, %113, %cst_77 {dimension_numbers = #tpu.dot_dimension_numbers<[1], [0], [0], [1], [0, 0, 1, 1], [], []>} : vector<16x16xf32>, vector<16x16xf32>, vector<16x16xf32> -> vector<16x16xf32>
    %189 = vector.broadcast %17 : vector<1x16xf32> to vector<16x16xf32>
    %190 = arith.mulf %189, %188 : vector<16x16xf32>
    %191 = arith.addf %157, %190 : vector<16x16xf32>
    %c1_78 = arith.constant 1 : index
    %c0_79 = arith.constant 0 : index
    %c0_80 = arith.constant 0 : index
    %192 = vector.load %arg6[%c1_78, %c0_79, %c0_80] : memref<2x1x16xf32, #tpu.memory_space<vmem>>, vector<1x1x16xf32>
    %193 = vector.shape_cast %192 : vector<1x1x16xf32> to vector<1x16xf32>
    %194 = vector.broadcast %193 : vector<1x16xf32> to vector<16x16xf32>
    %195 = arith.addf %191, %194 : vector<16x16xf32>
    %cst_81 = arith.constant 0.000000e+00 : f32
    %196 = vector.broadcast %cst_81 : f32 to vector<16x16xf32>
    %197 = arith.cmpf ogt, %195, %196 : vector<16x16xf32>
    %cst_82 = arith.constant 0.000000e+00 : f32
    %198 = vector.broadcast %cst_82 : f32 to vector<16x16xf32>
    %199 = arith.minimumf %195, %198 : vector<16x16xf32>
    %200 = math.exp %199 : vector<16x16xf32>
    %cst_83 = arith.constant 1.000000e+00 : f32
    %201 = vector.broadcast %cst_83 : f32 to vector<16x16xf32>
    %202 = arith.subf %200, %201 : vector<16x16xf32>
    %203 = arith.select %197, %195, %202 : vector<16x16xi1>, vector<16x16xf32>
    %c0_84 = arith.constant 0 : index
    %c0_85 = arith.constant 0 : index
    %204 = vector.load %arg7[%c0_84, %c0_85] : memref<16x128xf32, #tpu.memory_space<vmem>>, vector<16x128xf32>
    %c0_86 = arith.constant 0 : index
    %c0_87 = arith.constant 0 : index
    %205 = vector.load %arg8[%c0_86, %c0_87] : memref<1x128xf32, #tpu.memory_space<vmem>>, vector<1x128xf32>
    %c0_88 = arith.constant 0 : index
    %c0_89 = arith.constant 0 : index
    %206 = vector.load %arg9[%c0_88, %c0_89] : memref<1x128xf32, #tpu.memory_space<vmem>>, vector<1x128xf32>
    %c0_90 = arith.constant 0 : index
    %c0_91 = arith.constant 0 : index
    %207 = vector.load %arg10[%c0_90, %c0_91] : memref<1x1xf32, #tpu.memory_space<vmem>>, vector<1x1xf32>
    %cst_92 = arith.constant dense<0.000000e+00> : vector<16x128xf32>
    %208 = tpu.matmul %110, %204, %cst_92 {dimension_numbers = #tpu.dot_dimension_numbers<[1], [0], [0], [1], [0, 0, 1, 1], [], []>} : vector<16x16xf32>, vector<16x128xf32>, vector<16x128xf32> -> vector<16x128xf32>
    %209 = vector.broadcast %205 : vector<1x128xf32> to vector<16x128xf32>
    %210 = arith.addf %208, %209 : vector<16x128xf32>
    %211 = math.tanh %210 : vector<16x128xf32>
    %212 = vector.broadcast %206 : vector<1x128xf32> to vector<16x128xf32>
    %213 = arith.mulf %211, %212 : vector<16x128xf32>
    %cst_93 = arith.constant dense<0.000000e+00> : vector<16xf32>
    %214 = vector.multi_reduction <add>, %213, %cst_93 [1] : vector<16x128xf32> to vector<16xf32>
    %215 = vector.shape_cast %214 : vector<16xf32> to vector<16x1xf32>
    %216 = vector.broadcast %207 : vector<1x1xf32> to vector<16x1xf32>
    %217 = arith.addf %215, %216 : vector<16x1xf32>
    %cst_94 = arith.constant dense<0.000000e+00> : vector<16x128xf32>
    %218 = tpu.matmul %203, %204, %cst_94 {dimension_numbers = #tpu.dot_dimension_numbers<[1], [0], [0], [1], [0, 0, 1, 1], [], []>} : vector<16x16xf32>, vector<16x128xf32>, vector<16x128xf32> -> vector<16x128xf32>
    %219 = vector.broadcast %205 : vector<1x128xf32> to vector<16x128xf32>
    %220 = arith.addf %218, %219 : vector<16x128xf32>
    %221 = math.tanh %220 : vector<16x128xf32>
    %222 = vector.broadcast %206 : vector<1x128xf32> to vector<16x128xf32>
    %223 = arith.mulf %221, %222 : vector<16x128xf32>
    %cst_95 = arith.constant dense<0.000000e+00> : vector<16xf32>
    %224 = vector.multi_reduction <add>, %223, %cst_95 [1] : vector<16x128xf32> to vector<16xf32>
    %225 = vector.shape_cast %224 : vector<16xf32> to vector<16x1xf32>
    %226 = vector.broadcast %207 : vector<1x1xf32> to vector<16x1xf32>
    %227 = arith.addf %225, %226 : vector<16x1xf32>
    %228 = arith.maximumf %217, %227 : vector<16x1xf32>
    %229 = arith.subf %217, %228 : vector<16x1xf32>
    %230 = math.exp %229 : vector<16x1xf32>
    %231 = arith.subf %227, %228 : vector<16x1xf32>
    %232 = math.exp %231 : vector<16x1xf32>
    %233 = arith.addf %230, %232 : vector<16x1xf32>
    %234 = tpu.reciprocal %233 {approx = true} : vector<16x1xf32> -> vector<16x1xf32>
    %235 = arith.mulf %230, %234 : vector<16x1xf32>
    %236 = vector.broadcast %235 : vector<16x1xf32> to vector<16x16xf32>
    %237 = arith.mulf %236, %110 : vector<16x16xf32>
    %238 = arith.mulf %232, %234 : vector<16x1xf32>
    %239 = vector.broadcast %238 : vector<16x1xf32> to vector<16x16xf32>
    %240 = arith.mulf %239, %203 : vector<16x16xf32>
    %241 = arith.addf %237, %240 : vector<16x16xf32>
    %c0_96 = arith.constant 0 : index
    %c0_97 = arith.constant 0 : index
    %242 = vector.load %arg11[%c0_96, %c0_97] : memref<16x16xf32, #tpu.memory_space<vmem>>, vector<16x16xf32>
    tpu.vector_store %arg11[%c0_96, %c0_97], %241 {strides = array<i32>} : memref<16x16xf32, #tpu.memory_space<vmem>>, vector<16x16xf32>,
    return
  }
  func.func @transform_0(%arg0: i32) -> (i32, i32) {
    %c0_i32 = arith.constant 0 : i32
    %c0_i32_0 = arith.constant 0 : i32
    %c0_i32_1 = arith.constant 0 : i32
    return %c0_i32, %c0_i32_0 : i32, i32
  }
  func.func @transform_1(%arg0: i32) -> (i32, i32, i32) {
    %c0_i32 = arith.constant 0 : i32
    %c0_i32_0 = arith.constant 0 : i32
    %c0_i32_1 = arith.constant 0 : i32
    %c0_i32_2 = arith.constant 0 : i32
    return %c0_i32, %c0_i32_0, %c0_i32_1 : i32, i32, i32
  }
  func.func @transform_2(%arg0: i32) -> (i32, i32, i32) {
    %c0_i32 = arith.constant 0 : i32
    %c0_i32_0 = arith.constant 0 : i32
    %c0_i32_1 = arith.constant 0 : i32
    %c0_i32_2 = arith.constant 0 : i32
    return %c0_i32, %c0_i32_0, %c0_i32_1 : i32, i32, i32
  }
  func.func @transform_3(%arg0: i32) -> (i32, i32, i32) {
    %c0_i32 = arith.constant 0 : i32
    %c0_i32_0 = arith.constant 0 : i32
    %c0_i32_1 = arith.constant 0 : i32
    %c0_i32_2 = arith.constant 0 : i32
    return %c0_i32, %c0_i32_0, %c0_i32_1 : i32, i32, i32
  }
  func.func @transform_4(%arg0: i32) -> (i32, i32, i32) {
    %c0_i32 = arith.constant 0 : i32
    %c0_i32_0 = arith.constant 0 : i32
    %c0_i32_1 = arith.constant 0 : i32
    %c0_i32_2 = arith.constant 0 : i32
    return %c0_i32, %c0_i32_0, %c0_i32_1 : i32, i32, i32
  }
  func.func @transform_5(%arg0: i32) -> (i32, i32, i32) {
    %c0_i32 = arith.constant 0 : i32
    %c0_i32_0 = arith.constant 0 : i32
    %c0_i32_1 = arith.constant 0 : i32
    %c0_i32_2 = arith.constant 0 : i32
    return %c0_i32, %c0_i32_0, %c0_i32_1 : i32, i32, i32
  }
  func.func @transform_6(%arg0: i32) -> (i32, i32) {
    %c0_i32 = arith.constant 0 : i32
    %c0_i32_0 = arith.constant 0 : i32
    %c0_i32_1 = arith.constant 0 : i32
    return %c0_i32, %c0_i32_0 : i32, i32
  }
  func.func @transform_7(%arg0: i32) -> (i32, i32) {
    %c0_i32 = arith.constant 0 : i32
    %c0_i32_0 = arith.constant 0 : i32
    %c0_i32_1 = arith.constant 0 : i32
    return %c0_i32, %c0_i32_0 : i32, i32
  }
  func.func @transform_8(%arg0: i32) -> (i32, i32) {
    %c0_i32 = arith.constant 0 : i32
    %c0_i32_0 = arith.constant 0 : i32
    %c0_i32_1 = arith.constant 0 : i32
    return %c0_i32, %c0_i32_0 : i32, i32
  }
  func.func @transform_9(%arg0: i32) -> (i32, i32) {
    %c0_i32 = arith.constant 0 : i32
    %c0_i32_0 = arith.constant 0 : i32
    %c0_i32_1 = arith.constant 0 : i32
    return %c0_i32, %c0_i32_0 : i32, i32
  }
  func.func @transform_10(%arg0: i32) -> (i32, i32) {
    %c0_i32 = arith.constant 0 : i32
    %c0_i32_0 = arith.constant 0 : i32
    %c0_i32_1 = arith.constant 0 : i32
    return %c0_i32, %c0_i32_0 : i32, i32
  }
}

</mosaic_0001>

<llo_original>
// kernel: tpu_custom_call.1
$region0: #{tpu_custom_call.1}
  #allocation0 [shape = 'u32[]', space=smem, size = 0x4, offset = 0x4, fixed_abs, tag = 'smem constant byte address 0x4 - core index']
  #allocation1 [shape = 'u32[72,128]{1,0:T(1,128)}', space=vmem, size = 0x9000, scoped, tag = 'internal scratch']
  #allocation2 [shape = 'f32[1,1]{1,0:T(1,128)S(1)}', space=vmem, size = 0x200, scoped, tag = 'scoped memory for tpu_custom_call.1']
  %s0 = inlined_call_operand.vmem [shape: f32[16,8], index: 0, kind: input, shape index: {}]
  %s1 = inlined_call_operand.hbm [shape: f32[2,16,16], index: 1, kind: input, shape index: {}]
  %s2 = inlined_call_operand.vmem [shape: f32[2,8,16], index: 2, kind: input, shape index: {}]
  %s3 = inlined_call_operand.vmem [shape: f32[2,2,16], index: 3, kind: input, shape index: {}]
  %s4 = inlined_call_operand.vmem [shape: f32[2,1,16], index: 4, kind: input, shape index: {}]
  %s5 = inlined_call_operand.vmem [shape: f32[2,1,16], index: 5, kind: input, shape index: {}]
  %s6 = inlined_call_operand.hbm [shape: f32[16,128], index: 6, kind: input, shape index: {}]
  %s7 = inlined_call_operand.vmem [shape: f32[1,128], index: 7, kind: input, shape index: {}]
  %s8 = inlined_call_operand.vmem [shape: f32[1,128], index: 8, kind: input, shape index: {}]
  %s9 = inlined_call_operand.<no memory space> [shape: f32[1,1], index: 9, kind: input, shape index: {}]
  %s10 = inlined_call_operand.hbm [shape: f32[16,16], index: 10, kind: output, shape index: {}]
  %s11 = sld [smem:[#allocation0]]
  $region58: #{tpu_custom_call.1} parent=0
    _
  %s13 = ssub.s32 1, %s11
  %s14 = scalar_select 0, %s13, %s11
  %v15 = vstv %s9
  %16 = vst [vmem:[#allocation2] sm:$0x1] %v15
  $region1: #{tpu_custom_call.1} parent=0
    #allocation3 [shape = 'u8[16384]{0}', space=vmem, size = 0x4000, scoped, tag = 'input window, operand 1, single buffered']
    #allocation4 [shape = 's32[1]{0}', space=sflag, size = 0x4, scoped, tag = 'scoped memory for tpu_custom_call.1']
    #allocation5 [shape = 's32[1]{0}', space=sflag, size = 0x4, scoped, tag = 'scoped memory for tpu_custom_call.1']
    #allocation6 [shape = 'u8[8192]{0}', space=vmem, size = 0x2000, scoped, tag = 'input window, operand 6, single buffered']
    #allocation7 [shape = 's32[1]{0}', space=sflag, size = 0x4, scoped, tag = 'scoped memory for tpu_custom_call.1']
    #allocation8 [shape = 'u8[8192]{0}', space=vmem, size = 0x2000, scoped, tag = 'output window, operand 0, single buffered']
    %17 = vsyncpa [#allocation4], 0
    %18 = vsyncpa [#allocation7], 0
    %19 = vsyncpa [#allocation5], 0
    // Predicated region
    $region2: #{tpu_custom_call.1} parent=1 // pred_check
      _
    $region3: #{tpu_custom_call.1} parent=1 // pred_check_branch
      %21 = sbr.rel (0) target = $region5
    $region4: #{tpu_custom_call.1} parent=1 // pred_region
      _
    $region5: #{tpu_custom_call.1} parent=1 // pred_fallthru
      _
    // Predicated region
    $region6: #{tpu_custom_call.1} parent=1 // pred_check
      _
    $region7: #{tpu_custom_call.1} parent=1 // pred_check_branch
      %23 = sbr.rel (0) target = $region9
    $region8: #{tpu_custom_call.1} parent=1 // pred_region
      %25 = vsyncadd [#allocation4], 0
      %s26 = sshll.u32 %s1, 4
      %s27 = int_to_ptr.hbm [resolvable:$true] %s26
      %s28 = sshll.u32 [#allocation3], 4
      %s29 = int_to_ptr.vmem [resolvable:$true] %s28
      %34 = dma.hbm_to_vmem [thread:$0]  %s27, 512, %s29, [#allocation4], 128, 128, 8
    $region9: #{tpu_custom_call.1} parent=1 // pred_fallthru
      _
    // Predicated region
    $region10: #{tpu_custom_call.1} parent=1 // pred_check
      _
    $region11: #{tpu_custom_call.1} parent=1 // pred_check_branch
      %36 = sbr.rel (0) target = $region13
    $region12: #{tpu_custom_call.1} parent=1 // pred_region
      _
    $region13: #{tpu_custom_call.1} parent=1 // pred_fallthru
      _
    // Predicated region
    $region14: #{tpu_custom_call.1} parent=1 // pred_check
      _
    $region15: #{tpu_custom_call.1} parent=1 // pred_check_branch
      %38 = sbr.rel (0) target = $region17
    $region16: #{tpu_custom_call.1} parent=1 // pred_region
      _
    $region17: #{tpu_custom_call.1} parent=1 // pred_fallthru
      _
    // Predicated region
    $region18: #{tpu_custom_call.1} parent=1 // pred_check
      _
    $region19: #{tpu_custom_call.1} parent=1 // pred_check_branch
      %40 = sbr.rel (0) target = $region21
    $region20: #{tpu_custom_call.1} parent=1 // pred_region
      _
    $region21: #{tpu_custom_call.1} parent=1 // pred_fallthru
      _
    // Predicated region
    $region22: #{tpu_custom_call.1} parent=1 // pred_check
      _
    $region23: #{tpu_custom_call.1} parent=1 // pred_check_branch
      %42 = sbr.rel (0) target = $region25
    $region24: #{tpu_custom_call.1} parent=1 // pred_region
      _
    $region25: #{tpu_custom_call.1} parent=1 // pred_fallthru
      _
    // Predicated region
    $region26: #{tpu_custom_call.1} parent=1 // pred_check
      _
    $region27: #{tpu_custom_call.1} parent=1 // pred_check_branch
      %44 = sbr.rel (0) target = $region29
    $region28: #{tpu_custom_call.1} parent=1 // pred_region
      %46 = vsyncadd [#allocation7], 0
      %s47 = sshll.u32 %s6, 4
      %s48 = int_to_ptr.hbm [resolvable:$true] %s47
      %s49 = sshll.u32 [#allocation6], 4
      %s50 = int_to_ptr.vmem [resolvable:$true] %s49
      %55 = dma.hbm_to_vmem [thread:$0]  %s48, 256, %s50, [#allocation7], 128, 128, 8
    $region29: #{tpu_custom_call.1} parent=1 // pred_fallthru
      _
    // Predicated region
    $region30: #{tpu_custom_call.1} parent=1 // pred_check
      _
    $region31: #{tpu_custom_call.1} parent=1 // pred_check_branch
      %57 = sbr.rel (0) target = $region33
    $region32: #{tpu_custom_call.1} parent=1 // pred_region
      _
    $region33: #{tpu_custom_call.1} parent=1 // pred_fallthru
      _
    // Predicated region
    $region34: #{tpu_custom_call.1} parent=1 // pred_check
      _
    $region35: #{tpu_custom_call.1} parent=1 // pred_check_branch
      %59 = sbr.rel (0) target = $region37
    $region36: #{tpu_custom_call.1} parent=1 // pred_region
      _
    $region37: #{tpu_custom_call.1} parent=1 // pred_fallthru
      _
    // Predicated region
    $region38: #{tpu_custom_call.1} parent=1 // pred_check
      _
    $region39: #{tpu_custom_call.1} parent=1 // pred_check_branch
      %61 = sbr.rel (0) target = $region41
    $region40: #{tpu_custom_call.1} parent=1 // pred_region
      _
    $region41: #{tpu_custom_call.1} parent=1 // pred_fallthru
      _
    // Predicated region
    $region42: #{tpu_custom_call.1} parent=1 // pred_check
      _
    $region43: #{tpu_custom_call.1} parent=1 // pred_check_branch
      %63 = sbr.rel (0) target = $region45
    $region44: #{tpu_custom_call.1} parent=1 // pred_region
      %65 = dma.done [#allocation4], 512
    $region45: #{tpu_custom_call.1} parent=1 // pred_fallthru
      _
    // Predicated region
    $region46: #{tpu_custom_call.1} parent=1 // pred_check
      _
    $region47: #{tpu_custom_call.1} parent=1 // pred_check_branch
      %67 = sbr.rel (0) target = $region49
    $region48: #{tpu_custom_call.1} parent=1 // pred_region
      %69 = dma.done [#allocation7], 256
    $region49: #{tpu_custom_call.1} parent=1 // pred_fallthru
      _
    %v70 = vld [vmem:[%s0] sm:$0xff]
    %v71 = vld [vmem:[%s0 + $0x8] sm:$0xff]
    %v72 = vlaneseq
    %v73 = vand.u32 %v72, 127
    %vm74 = vcmp.ge.s32.totalorder %v73, 0
    %vm75 = vcmp.lt.s32.totalorder %v73, 8
    %vm76 = vmand %vm74, %vm75
    %v77 = vsel %vm76, 1.0, 0.0
    %vm78 = vcmp.ge.s32.totalorder %v73, 8
    %vm79 = vcmp.lt.s32.totalorder %v73, 16
    %vm80 = vmand %vm78, %vm79
    %v81 = vsel %vm80, 1.0, 0.0
    %v82 = vld [vmem:[%s2] sm:$0xff]
    %vm83 = vcmask 64512
    %v85 = vsel %vm83, %v70, 0
    %v88 = vsel %vm83, %v71, 0
    %90 = vmatpush.msra.mxu0 0.0
    %91 = vmatpush.msra.mxu0 0.0
    %92 = vmatpush.msra.mxu0 0.0
    %93 = vmatpush.msra.mxu0 0.0
    %94 = vmatpush.msra.mxu0 0.0
    %95 = vmatpush.msra.mxu0 0.0
    %96 = vmatpush.msra.mxu0 0.0
    %97 = vmatpush.msra.mxu0 0.0
    %98 = vmatpush.msra.mxu0 0.0
    %99 = vmatpush.msra.mxu0 0.0
    %100 = vmatpush.msra.mxu0 0.0
    %101 = vmatpush.msra.mxu0 0.0
    %102 = vmatpush.msra.mxu0 0.0
    %103 = vmatpush.msra.mxu0 0.0
    %104 = vmatpush.msra.mxu0 0.0
    %105 = vmatpush.msra.mxu0 %v82
    %106 = vmatmul.f32.gmra.mxu0 %v85
    %v107 = vpop.f32.mrf.mxu0
    %v108 = vadd.f32 0.0, %v107
    %109 = vmatmul.f32.gmra.mxu0 %v88
    %v110 = vpop.f32.mrf.mxu0
    %v111 = vadd.f32 0.0, %v110
    %112 = vdwg.mxu0
    %v113 = vld [vmem:[%s3] sm:$0x3]
    %vm114 = vcmask 130048
    %v116 = vsel %vm114, %v113, 0
    %v119 = vsel %vm114, %v108, 0
    %v122 = vsel %vm114, %v111, 0
    %124 = vmatpush.xpose.msra.mxu0 0.0
    %125 = vmatpush.xpose.msra.mxu0 0.0
    %126 = vmatpush.xpose.msra.mxu0 0.0
    %127 = vmatpush.xpose.msra.mxu0 0.0
    %128 = vmatpush.xpose.msra.mxu0 0.0
    %129 = vmatpush.xpose.msra.mxu0 0.0
    %130 = vmatpush.xpose.msra.mxu0 0.0
    %131 = vmatpush.xpose.msra.mxu0 0.0
    %132 = vmatpush.xpose.msra.mxu0 0.0
    %133 = vmatpush.xpose.msra.mxu0 0.0
    %134 = vmatpush.xpose.msra.mxu0 0.0
    %135 = vmatpush.xpose.msra.mxu0 0.0
    %136 = vmatpush.xpose.msra.mxu0 0.0
    %137 = vmatpush.xpose.msra.mxu0 0.0
    %138 = vmatpush.xpose.msra.mxu0 %v122
    %139 = vmatpush.xpose.msra.mxu0 %v119
    %140 = vmatmul.f32.gmra.mxu0 %v116
    %v141 = vpop.f32.mrf.mxu0
    %v142 = vadd.f32 0.0, %v141
    %143 = vdwg.mxu0
    %v144 = vld [vmem:[%s4] sm:$0x1]
    %v145 = vld [vmem:[#allocation3] sm:$0xff]
    %v146 = vld [vmem:[#allocation3 + $0x8] sm:$0xff]
    %vm147 = vcmp.gt.f32.partialorder %v145, 0.0
    %vm148 = vcmp.gt.f32.partialorder %v146, 0.0
    %v149 = vmul.f32 %v144, %v77
    %v151 = vperm.slane %v149, 0
    %v153 = vmul.f32 %v108, %v151
    %v154 = vmul.f32 %v111, %v151
    %v155 = vsel %vm114, %v153, 0.0
    %156 = vadd.xlane.f32.xlu0 %v155
    %v157 = vpop.xlane.xlu0 %156
    %v158 = vsel %vm114, %v154, 0.0
    %159 = vadd.xlane.f32.xlu0 %v158
    %v160 = vpop.xlane.xlu0 %159
    %v161 = vperm.slane %v142, 0
    %v162 = vadd.f32 %v157, %v161
    %v163 = vadd.f32 %v160, %v161
    %vm164 = vcmp.gt.f32.partialorder %v162, 0.0
    %vm165 = vcmp.gt.f32.partialorder %v163, 0.0
    %v166 = vmul.f32 %v162, 0.2
    %v167 = vmul.f32 %v163, 0.2
    %v168 = vsel %vm164, %v162, %v166
    %v169 = vsel %vm165, %v163, %v167
    %v170 = vsel %vm147, %v168, -1e+09
    %v171 = vsel %vm148, %v169, -1e+09
    %v172 = vsel %vm114, %v170, -inf
    %173 = vmax.xlane.f32.xlu0 %v172
    %v174 = vpop.xlane.xlu0 %173
    %v175 = vsel %vm114, %v171, -inf
    %176 = vmax.xlane.f32.xlu0 %v175
    %v177 = vpop.xlane.xlu0 %176
    %v178 = vsub.f32 %v170, %v174
    %v179 = vsub.f32 %v171, %v177
    %v180 = vmul.f32 %v178, 1.442695
    %v181 = vpow.pop %v180
    %v182 = vmul.f32 %v179, 1.442695
    %v183 = vpow.pop %v182
    %v184 = vsel %vm147, %v181, 0.0
    %v185 = vsel %vm148, %v183, 0.0
    %v186 = vsel %vm114, %v184, 0.0
    %187 = vadd.xlane.f32.xlu0 %v186
    %v188 = vpop.xlane.xlu0 %187
    %v189 = vsel %vm114, %v185, 0.0
    %190 = vadd.xlane.f32.xlu0 %v189
    %v191 = vpop.xlane.xlu0 %190
    %v192 = vmax.f32 %v188, 1e-20
    %v193 = vmax.f32 %v191, 1e-20
    %v194 = vrcp.pop %v192
    %v195 = vrcp.pop %v193
    %v196 = vmul.f32 %v184, %v194
    %v197 = vmul.f32 %v185, %v195
    %v199 = vsel %vm114, %v196, 0
    %v202 = vsel %vm114, %v197, 0
    %204 = vmatpush.msra.mxu0 0.0
    %205 = vmatpush.msra.mxu0 0.0
    %206 = vmatpush.msra.mxu0 0.0
    %207 = vmatpush.msra.mxu0 0.0
    %208 = vmatpush.msra.mxu0 0.0
    %209 = vmatpush.msra.mxu0 0.0
    %210 = vmatpush.msra.mxu0 0.0
    %211 = vmatpush.msra.mxu0 0.0
    %212 = vmatpush.msra.mxu0 0.0
    %213 = vmatpush.msra.mxu0 0.0
    %214 = vmatpush.msra.mxu0 0.0
    %215 = vmatpush.msra.mxu0 0.0
    %216 = vmatpush.msra.mxu0 0.0
    %217 = vmatpush.msra.mxu0 0.0
    %218 = vmatpush.msra.mxu0 %v111
    %219 = vmatpush.msra.mxu0 %v108
    %220 = vmatmul.f32.gmra.mxu0 %v199
    %v221 = vpop.f32.mrf.mxu0
    %v222 = vadd.f32 0.0, %v221
    %223 = vmatmul.f32.gmra.mxu0 %v202
    %v224 = vpop.f32.mrf.mxu0
    %v225 = vadd.f32 0.0, %v224
    %226 = vdwg.mxu0
    %v227 = vmul.f32 %v77, %v222
    %v228 = vmul.f32 %v77, %v225
    %v229 = vadd.f32 %v227, 0.0
    %v230 = vadd.f32 %v228, 0.0
    %v231 = vmul.f32 %v144, %v81
    %v233 = vperm.slane %v231, 0
    %v235 = vmul.f32 %v108, %v233
    %v236 = vmul.f32 %v111, %v233
    %v237 = vsel %vm114, %v235, 0.0
    %238 = vadd.xlane.f32.xlu0 %v237
    %v239 = vpop.xlane.xlu0 %238
    %v240 = vsel %vm114, %v236, 0.0
    %241 = vadd.xlane.f32.xlu0 %v240
    %v242 = vpop.xlane.xlu0 %241
    %v243 = vperm.slane %v142, 1
    %v244 = vadd.f32 %v239, %v243
    %v245 = vadd.f32 %v242, %v243
    %vm246 = vcmp.gt.f32.partialorder %v244, 0.0
    %vm247 = vcmp.gt.f32.partialorder %v245, 0.0
    %v248 = vmul.f32 %v244, 0.2
    %v249 = vmul.f32 %v245, 0.2
    %v250 = vsel %vm246, %v244, %v248
    %v251 = vsel %vm247, %v245, %v249
    %v252 = vsel %vm147, %v250, -1e+09
    %v253 = vsel %vm148, %v251, -1e+09
    %v254 = vsel %vm114, %v252, -inf
    %255 = vmax.xlane.f32.xlu0 %v254
    %v256 = vpop.xlane.xlu0 %255
    %v257 = vsel %vm114, %v253, -inf
    %258 = vmax.xlane.f32.xlu0 %v257
    %v259 = vpop.xlane.xlu0 %258
    %v260 = vsub.f32 %v252, %v256
    %v261 = vsub.f32 %v253, %v259
    %v262 = vmul.f32 %v260, 1.442695
    %v263 = vpow.pop %v262
    %v264 = vmul.f32 %v261, 1.442695
    %v265 = vpow.pop %v264
    %v266 = vsel %vm147, %v263, 0.0
    %v267 = vsel %vm148, %v265, 0.0
    %v268 = vsel %vm114, %v266, 0.0
    %269 = vadd.xlane.f32.xlu0 %v268
    %v270 = vpop.xlane.xlu0 %269
    %v271 = vsel %vm114, %v267, 0.0
    %272 = vadd.xlane.f32.xlu0 %v271
    %v273 = vpop.xlane.xlu0 %272
    %v274 = vmax.f32 %v270, 1e-20
    %v275 = vmax.f32 %v273, 1e-20
    %v276 = vrcp.pop %v274
    %v277 = vrcp.pop %v275
    %v278 = vmul.f32 %v266, %v276
    %v279 = vmul.f32 %v267, %v277
    %v281 = vsel %vm114, %v278, 0
    %v284 = vsel %vm114, %v279, 0
    %286 = vmatpush.msra.mxu0 0.0
    %287 = vmatpush.msra.mxu0 0.0
    %288 = vmatpush.msra.mxu0 0.0
    %289 = vmatpush.msra.mxu0 0.0
    %290 = vmatpush.msra.mxu0 0.0
    %291 = vmatpush.msra.mxu0 0.0
    %292 = vmatpush.msra.mxu0 0.0
    %293 = vmatpush.msra.mxu0 0.0
    %294 = vmatpush.msra.mxu0 0.0
    %295 = vmatpush.msra.mxu0 0.0
    %296 = vmatpush.msra.mxu0 0.0
    %297 = vmatpush.msra.mxu0 0.0
    %298 = vmatpush.msra.mxu0 0.0
    %299 = vmatpush.msra.mxu0 0.0
    %300 = vmatpush.msra.mxu0 %v111
    %301 = vmatpush.msra.mxu0 %v108
    %302 = vmatmul.f32.gmra.mxu0 %v281
    %v303 = vpop.f32.mrf.mxu0
    %v304 = vadd.f32 0.0, %v303
    %305 = vmatmul.f32.gmra.mxu0 %v284
    %v306 = vpop.f32.mrf.mxu0
    %v307 = vadd.f32 0.0, %v306
    %308 = vdwg.mxu0
    %v309 = vmul.f32 %v81, %v304
    %v310 = vmul.f32 %v81, %v307
    %v311 = vadd.f32 %v229, %v309
    %v312 = vadd.f32 %v230, %v310
    %v313 = vld [vmem:[%s5] sm:$0x1]
    %v315 = vperm.slane %v313, 0
    %v317 = vadd.f32 %v311, %v315
    %v318 = vadd.f32 %v312, %v315
    %vm319 = vcmp.gt.f32.partialorder %v317, 0.0
    %vm320 = vcmp.gt.f32.partialorder %v318, 0.0
    %v321 = vmin.f32 %v317, 0.0
    %v322 = vmin.f32 %v318, 0.0
    %v323 = vmul.f32 %v321, 1.442695
    %v324 = vpow.pop %v323
    %v325 = vmul.f32 %v322, 1.442695
    %v326 = vpow.pop %v325
    %v327 = vsub.f32 %v324, 1.0
    %v328 = vsub.f32 %v326, 1.0
    %v329 = vsel %vm319, %v317, %v327
    %v330 = vsel %vm320, %v318, %v328
    %s331 = scalar_lea.vmem %s2, 8
    %v332 = vld [vmem:[%s331] sm:$0xff]
    %333 = vmatpush.msra.mxu0 0.0
    %334 = vmatpush.msra.mxu0 0.0
    %335 = vmatpush.msra.mxu0 0.0
    %336 = vmatpush.msra.mxu0 0.0
    %337 = vmatpush.msra.mxu0 0.0
    %338 = vmatpush.msra.mxu0 0.0
    %339 = vmatpush.msra.mxu0 0.0
    %340 = vmatpush.msra.mxu0 0.0
    %341 = vmatpush.msra.mxu0 0.0
    %342 = vmatpush.msra.mxu0 0.0
    %343 = vmatpush.msra.mxu0 0.0
    %344 = vmatpush.msra.mxu0 0.0
    %345 = vmatpush.msra.mxu0 0.0
    %346 = vmatpush.msra.mxu0 0.0
    %347 = vmatpush.msra.mxu0 0.0
    %348 = vmatpush.msra.mxu0 %v332
    %349 = vmatmul.f32.gmra.mxu0 %v85
    %v350 = vpop.f32.mrf.mxu0
    %v351 = vadd.f32 0.0, %v350
    %352 = vmatmul.f32.gmra.mxu0 %v88
    %v353 = vpop.f32.mrf.mxu0
    %v354 = vadd.f32 0.0, %v353
    %355 = vdwg.mxu0
    %s356 = scalar_lea.vmem %s3, 2
    %v357 = vld [vmem:[%s356] sm:$0x3]
    %v359 = vsel %vm114, %v357, 0
    %v362 = vsel %vm114, %v351, 0
    %v365 = vsel %vm114, %v354, 0
    %367 = vmatpush.xpose.msra.mxu0 0.0
    %368 = vmatpush.xpose.msra.mxu0 0.0
    %369 = vmatpush.xpose.msra.mxu0 0.0
    %370 = vmatpush.xpose.msra.mxu0 0.0
    %371 = vmatpush.xpose.msra.mxu0 0.0
    %372 = vmatpush.xpose.msra.mxu0 0.0
    %373 = vmatpush.xpose.msra.mxu0 0.0
    %374 = vmatpush.xpose.msra.mxu0 0.0
    %375 = vmatpush.xpose.msra.mxu0 0.0
    %376 = vmatpush.xpose.msra.mxu0 0.0
    %377 = vmatpush.xpose.msra.mxu0 0.0
    %378 = vmatpush.xpose.msra.mxu0 0.0
    %379 = vmatpush.xpose.msra.mxu0 0.0
    %380 = vmatpush.xpose.msra.mxu0 0.0
    %381 = vmatpush.xpose.msra.mxu0 %v365
    %382 = vmatpush.xpose.msra.mxu0 %v362
    %383 = vmatmul.f32.gmra.mxu0 %v359
    %v384 = vpop.f32.mrf.mxu0
    %v385 = vadd.f32 0.0, %v384
    %386 = vdwg.mxu0
    %s387 = scalar_lea.vmem %s4, 1
    %v388 = vld [vmem:[%s387] sm:$0x1]
    %s389 = scalar_lea.vmem [#allocation3], 16
    %v390 = vld [vmem:[%s389] sm:$0xff]
    %v391 = vld [vmem:[%s389 + $0x8] sm:$0xff]
    %vm392 = vcmp.gt.f32.partialorder %v390, 0.0
    %vm393 = vcmp.gt.f32.partialorder %v391, 0.0
    %v394 = vmul.f32 %v388, %v77
    %v396 = vperm.slane %v394, 0
    %v398 = vmul.f32 %v351, %v396
    %v399 = vmul.f32 %v354, %v396
    %v400 = vsel %vm114, %v398, 0.0
    %401 = vadd.xlane.f32.xlu0 %v400
    %v402 = vpop.xlane.xlu0 %401
    %v403 = vsel %vm114, %v399, 0.0
    %404 = vadd.xlane.f32.xlu0 %v403
    %v405 = vpop.xlane.xlu0 %404
    %v406 = vperm.slane %v385, 0
    %v407 = vadd.f32 %v402, %v406
    %v408 = vadd.f32 %v405, %v406
    %vm409 = vcmp.gt.f32.partialorder %v407, 0.0
    %vm410 = vcmp.gt.f32.partialorder %v408, 0.0
    %v411 = vmul.f32 %v407, 0.2
    %v412 = vmul.f32 %v408, 0.2
    %v413 = vsel %vm409, %v407, %v411
    %v414 = vsel %vm410, %v408, %v412
    %v415 = vsel %vm392, %v413, -1e+09
    %v416 = vsel %vm393, %v414, -1e+09
    %v417 = vsel %vm114, %v415, -inf
    %418 = vmax.xlane.f32.xlu0 %v417
    %v419 = vpop.xlane.xlu0 %418
    %v420 = vsel %vm114, %v416, -inf
    %421 = vmax.xlane.f32.xlu0 %v420
    %v422 = vpop.xlane.xlu0 %421
    %v423 = vsub.f32 %v415, %v419
    %v424 = vsub.f32 %v416, %v422
    %v425 = vmul.f32 %v423, 1.442695
    %v426 = vpow.pop %v425
    %v427 = vmul.f32 %v424, 1.442695
    %v428 = vpow.pop %v427
    %v429 = vsel %vm392, %v426, 0.0
    %v430 = vsel %vm393, %v428, 0.0
    %v431 = vsel %vm114, %v429, 0.0
    %432 = vadd.xlane.f32.xlu0 %v431
    %v433 = vpop.xlane.xlu0 %432
    %v434 = vsel %vm114, %v430, 0.0
    %435 = vadd.xlane.f32.xlu0 %v434
    %v436 = vpop.xlane.xlu0 %435
    %v437 = vmax.f32 %v433, 1e-20
    %v438 = vmax.f32 %v436, 1e-20
    %v439 = vrcp.pop %v437
    %v440 = vrcp.pop %v438
    %v441 = vmul.f32 %v429, %v439
    %v442 = vmul.f32 %v430, %v440
    %v444 = vsel %vm114, %v441, 0
    %v447 = vsel %vm114, %v442, 0
    %449 = vmatpush.msra.mxu0 0.0
    %450 = vmatpush.msra.mxu0 0.0
    %451 = vmatpush.msra.mxu0 0.0
    %452 = vmatpush.msra.mxu0 0.0
    %453 = vmatpush.msra.mxu0 0.0
    %454 = vmatpush.msra.mxu0 0.0
    %455 = vmatpush.msra.mxu0 0.0
    %456 = vmatpush.msra.mxu0 0.0
    %457 = vmatpush.msra.mxu0 0.0
    %458 = vmatpush.msra.mxu0 0.0
    %459 = vmatpush.msra.mxu0 0.0
    %460 = vmatpush.msra.mxu0 0.0
    %461 = vmatpush.msra.mxu0 0.0
    %462 = vmatpush.msra.mxu0 0.0
    %463 = vmatpush.msra.mxu0 %v354
    %464 = vmatpush.msra.mxu0 %v351
    %465 = vmatmul.f32.gmra.mxu0 %v444
    %v466 = vpop.f32.mrf.mxu0
    %v467 = vadd.f32 0.0, %v466
    %468 = vmatmul.f32.gmra.mxu0 %v447
    %v469 = vpop.f32.mrf.mxu0
    %v470 = vadd.f32 0.0, %v469
    %471 = vdwg.mxu0
    %v472 = vmul.f32 %v77, %v467
    %v473 = vmul.f32 %v77, %v470
    %v474 = vadd.f32 %v472, 0.0
    %v475 = vadd.f32 %v473, 0.0
    %v476 = vmul.f32 %v388, %v81
    %v478 = vperm.slane %v476, 0
    %v480 = vmul.f32 %v351, %v478
    %v481 = vmul.f32 %v354, %v478
    %v482 = vsel %vm114, %v480, 0.0
    %483 = vadd.xlane.f32.xlu0 %v482
    %v484 = vpop.xlane.xlu0 %483
    %v485 = vsel %vm114, %v481, 0.0
    %486 = vadd.xlane.f32.xlu0 %v485
    %v487 = vpop.xlane.xlu0 %486
    %v488 = vperm.slane %v385, 1
    %v489 = vadd.f32 %v484, %v488
    %v490 = vadd.f32 %v487, %v488
    %vm491 = vcmp.gt.f32.partialorder %v489, 0.0
    %vm492 = vcmp.gt.f32.partialorder %v490, 0.0
    %v493 = vmul.f32 %v489, 0.2
    %v494 = vmul.f32 %v490, 0.2
    %v495 = vsel %vm491, %v489, %v493
    %v496 = vsel %vm492, %v490, %v494
    %v497 = vsel %vm392, %v495, -1e+09
    %v498 = vsel %vm393, %v496, -1e+09
    %v499 = vsel %vm114, %v497, -inf
    %500 = vmax.xlane.f32.xlu0 %v499
    %v501 = vpop.xlane.xlu0 %500
    %v502 = vsel %vm114, %v498, -inf
    %503 = vmax.xlane.f32.xlu0 %v502
    %v504 = vpop.xlane.xlu0 %503
    %v505 = vsub.f32 %v497, %v501
    %v506 = vsub.f32 %v498, %v504
    %v507 = vmul.f32 %v505, 1.442695
    %v508 = vpow.pop %v507
    %v509 = vmul.f32 %v506, 1.442695
    %v510 = vpow.pop %v509
    %v511 = vsel %vm392, %v508, 0.0
    %v512 = vsel %vm393, %v510, 0.0
    %v513 = vsel %vm114, %v511, 0.0
    %514 = vadd.xlane.f32.xlu0 %v513
    %v515 = vpop.xlane.xlu0 %514
    %v516 = vsel %vm114, %v512, 0.0
    %517 = vadd.xlane.f32.xlu0 %v516
    %v518 = vpop.xlane.xlu0 %517
    %v519 = vmax.f32 %v515, 1e-20
    %v520 = vmax.f32 %v518, 1e-20
    %v521 = vrcp.pop %v519
    %v522 = vrcp.pop %v520
    %v523 = vmul.f32 %v511, %v521
    %v524 = vmul.f32 %v512, %v522
    %v526 = vsel %vm114, %v523, 0
    %v529 = vsel %vm114, %v524, 0
    %531 = vmatpush.msra.mxu0 0.0
    %532 = vmatpush.msra.mxu0 0.0
    %533 = vmatpush.msra.mxu0 0.0
    %534 = vmatpush.msra.mxu0 0.0
    %535 = vmatpush.msra.mxu0 0.0
    %536 = vmatpush.msra.mxu0 0.0
    %537 = vmatpush.msra.mxu0 0.0
    %538 = vmatpush.msra.mxu0 0.0
    %539 = vmatpush.msra.mxu0 0.0
    %540 = vmatpush.msra.mxu0 0.0
    %541 = vmatpush.msra.mxu0 0.0
    %542 = vmatpush.msra.mxu0 0.0
    %543 = vmatpush.msra.mxu0 0.0
    %544 = vmatpush.msra.mxu0 0.0
    %545 = vmatpush.msra.mxu0 %v354
    %546 = vmatpush.msra.mxu0 %v351
    %547 = vmatmul.f32.gmra.mxu0 %v526
    %v548 = vpop.f32.mrf.mxu0
    %v549 = vadd.f32 0.0, %v548
    %550 = vmatmul.f32.gmra.mxu0 %v529
    %v551 = vpop.f32.mrf.mxu0
    %v552 = vadd.f32 0.0, %v551
    %553 = vdwg.mxu0
    %v554 = vmul.f32 %v81, %v549
    %v555 = vmul.f32 %v81, %v552
    %v556 = vadd.f32 %v474, %v554
    %v557 = vadd.f32 %v475, %v555
    %s558 = scalar_lea.vmem %s5, 1
    %v559 = vld [vmem:[%s558] sm:$0x1]
    %v561 = vperm.slane %v559, 0
    %v563 = vadd.f32 %v556, %v561
    %v564 = vadd.f32 %v557, %v561
    %vm565 = vcmp.gt.f32.partialorder %v563, 0.0
    %vm566 = vcmp.gt.f32.partialorder %v564, 0.0
    %v567 = vmin.f32 %v563, 0.0
    %v568 = vmin.f32 %v564, 0.0
    %v569 = vmul.f32 %v567, 1.442695
    %v570 = vpow.pop %v569
    %v571 = vmul.f32 %v568, 1.442695
    %v572 = vpow.pop %v571
    %v573 = vsub.f32 %v570, 1.0
    %v574 = vsub.f32 %v572, 1.0
    %v575 = vsel %vm565, %v563, %v573
    %v576 = vsel %vm566, %v564, %v574
    %v577 = vld [vmem:[#allocation6] sm:$0xff]
    %v578 = vld [vmem:[#allocation6 + $0x8] sm:$0xff]
    %v579 = vld [vmem:[%s7] sm:$0x1]
    %v580 = vld [vmem:[%s8] sm:$0x1]
    %v581 = vld [vmem:[#allocation2] sm:$0x1]
    %v583 = vperm.slane %v579, 0
    %v586 = vsel %vm114, %v329, 0
    %v589 = vsel %vm114, %v330, 0
    %591 = vmatpush.msra.mxu0 0.0
    %592 = vmatpush.msra.mxu0 0.0
    %593 = vmatpush.msra.mxu0 0.0
    %594 = vmatpush.msra.mxu0 0.0
    %595 = vmatpush.msra.mxu0 0.0
    %596 = vmatpush.msra.mxu0 0.0
    %597 = vmatpush.msra.mxu0 0.0
    %598 = vmatpush.msra.mxu0 0.0
    %599 = vmatpush.msra.mxu0 0.0
    %600 = vmatpush.msra.mxu0 0.0
    %601 = vmatpush.msra.mxu0 0.0
    %602 = vmatpush.msra.mxu0 0.0
    %603 = vmatpush.msra.mxu0 0.0
    %604 = vmatpush.msra.mxu0 0.0
    %605 = vmatpush.msra.mxu0 %v578
    %606 = vmatpush.msra.mxu0 %v577
    %607 = vmatmul.f32.gmra.mxu0 %v586
    %v608 = vpop.f32.mrf.mxu0
    %v609 = vadd.f32 %v583, %v608
    %610 = vmatmul.f32.gmra.mxu0 %v589
    %v611 = vpop.f32.mrf.mxu0
    %v612 = vadd.f32 %v583, %v611
    %613 = vdwg.mxu0
    %v614 = vtanh.pop %v609
    %v615 = vtanh.pop %v612
    %v617 = vperm.slane %v580, 0
    %v619 = vmul.f32 %v614, %v617
    %v620 = vmul.f32 %v615, %v617
    %621 = vadd.xlane.f32.xlu0 %v619
    %v622 = vpop.xlane.xlu0 %621
    %623 = vadd.xlane.f32.xlu0 %v620
    %v624 = vpop.xlane.xlu0 %623
    %v626 = vperm.slane %v581, 0
    %v628 = vadd.f32 %v622, %v626
    %v629 = vadd.f32 %v624, %v626
    %v631 = vsel %vm114, %v575, 0
    %v634 = vsel %vm114, %v576, 0
    %636 = vmatpush.msra.mxu0 0.0
    %637 = vmatpush.msra.mxu0 0.0
    %638 = vmatpush.msra.mxu0 0.0
    %639 = vmatpush.msra.mxu0 0.0
    %640 = vmatpush.msra.mxu0 0.0
    %641 = vmatpush.msra.mxu0 0.0
    %642 = vmatpush.msra.mxu0 0.0
    %643 = vmatpush.msra.mxu0 0.0
    %644 = vmatpush.msra.mxu0 0.0
    %645 = vmatpush.msra.mxu0 0.0
    %646 = vmatpush.msra.mxu0 0.0
    %647 = vmatpush.msra.mxu0 0.0
    %648 = vmatpush.msra.mxu0 0.0
    %649 = vmatpush.msra.mxu0 0.0
    %650 = vmatpush.msra.mxu0 %v578
    %651 = vmatpush.msra.mxu0 %v577
    %652 = vmatmul.f32.gmra.mxu0 %v631
    %v653 = vpop.f32.mrf.mxu0
    %v654 = vadd.f32 %v583, %v653
    %655 = vmatmul.f32.gmra.mxu0 %v634
    %v656 = vpop.f32.mrf.mxu0
    %v657 = vadd.f32 %v583, %v656
    %658 = vdwg.mxu0
    %v659 = vtanh.pop %v654
    %v660 = vtanh.pop %v657
    %v661 = vmul.f32 %v659, %v617
    %v662 = vmul.f32 %v660, %v617
    %663 = vadd.xlane.f32.xlu0 %v661
    %v664 = vpop.xlane.xlu0 %663
    %665 = vadd.xlane.f32.xlu0 %v662
    %v666 = vpop.xlane.xlu0 %665
    %v667 = vadd.f32 %v664, %v626
    %v668 = vadd.f32 %v666, %v626
    %v669 = vmax.f32 %v628, %v667
    %v670 = vmax.f32 %v629, %v668
    %v671 = vsub.f32 %v628, %v669
    %v672 = vsub.f32 %v629, %v670
    %v673 = vmul.f32 %v671, 1.442695
    %v674 = vpow.pop %v673
    %v675 = vmul.f32 %v672, 1.442695
    %v676 = vpow.pop %v675
    %v677 = vsub.f32 %v667, %v669
    %v678 = vsub.f32 %v668, %v670
    %v679 = vmul.f32 %v677, 1.442695
    %v680 = vpow.pop %v679
    %v681 = vmul.f32 %v678, 1.442695
    %v682 = vpow.pop %v681
    %v683 = vadd.f32 %v674, %v680
    %v684 = vadd.f32 %v676, %v682
    %v685 = vrcp.pop %v683
    %v686 = vrcp.pop %v684
    %v687 = vmul.f32 %v674, %v685
    %v688 = vmul.f32 %v676, %v686
    %690 = vset.pattern.permute.xlu0 0
    %691 = vperm.xlu0 %690, %v687
    %v692 = vpop.permute.xlu0 %691
    %695 = vset.pattern.permute.xlu0 0
    %696 = vperm.xlu0 %695, %v688
    %v697 = vpop.permute.xlu0 %696
    %v699 = vmul.f32 %v692, %v329
    %v700 = vmul.f32 %v697, %v330
    %v701 = vmul.f32 %v680, %v685
    %v702 = vmul.f32 %v682, %v686
    %704 = vset.pattern.permute.xlu0 0
    %705 = vperm.xlu0 %704, %v701
    %v706 = vpop.permute.xlu0 %705
    %709 = vset.pattern.permute.xlu0 0
    %710 = vperm.xlu0 %709, %v702
    %v711 = vpop.permute.xlu0 %710
    %v713 = vmul.f32 %v706, %v575
    %v714 = vmul.f32 %v711, %v576
    %v715 = vadd.f32 %v699, %v713
    %v716 = vadd.f32 %v700, %v714
    %717 = vst.msk [vmem:[#allocation8] sm:$0xff] %vm114, %v715
    %718 = vst.msk [vmem:[#allocation8 + $0x8] sm:$0xff] %vm114, %v716
    // Predicated region
    $region50: #{tpu_custom_call.1} parent=1 // pred_check
      _
    $region51: #{tpu_custom_call.1} parent=1 // pred_check_branch
      %720 = sbr.rel (0) target = $region53
    $region52: #{tpu_custom_call.1} parent=1 // pred_region
      %722 = vsyncadd [#allocation5], 0
      %s723 = sshll.u32 [#allocation8], 4
      %s724 = int_to_ptr.vmem [resolvable:$true] %s723
      %s725 = sshll.u32 %s10, 4
      %s726 = int_to_ptr.hbm [resolvable:$true] %s725
      %731 = dma.vmem_to_hbm [thread:$0]  %s724, 256, %s726, [#allocation5], 128, 128, 8
    $region53: #{tpu_custom_call.1} parent=1 // pred_fallthru
      _
    // Predicated region
    $region54: #{tpu_custom_call.1} parent=1 // pred_check
      _
    $region55: #{tpu_custom_call.1} parent=1 // pred_check_branch
      %733 = sbr.rel (0) target = $region57
    $region56: #{tpu_custom_call.1} parent=1 // pred_region
      %735 = dma.done [#allocation5], 256
    $region57: #{tpu_custom_call.1} parent=1 // pred_fallthru
      _
    %736 = vsyncpa [#allocation4], 1
    %737 = vsyncpa [#allocation7], 1
    %738 = vsyncpa [#allocation5], 1

</llo_original>
